<compile_context>
chip_gen: v7x
topology: tpu7x:2x2x1
jax: 0.10.0
libtpu: 0.0.40
codegen_flags: <defaults>
</compile_context>

<pallas_src>
import functools

import jax
import jax.numpy as jnp
from jax.experimental import pallas as pl
from jax.experimental.pallas import tpu as pltpu


# ----------------------------------------------------------------------------
# Kernels
# ----------------------------------------------------------------------------
def _mlp_kernel_single(h_ref, w1_ref, w3_ref, w2_ref, o_ref):
    """Weights-resident single pass (no F tiling, no accumulator scratch)."""
    h = h_ref[...]
    a = jnp.dot(h, w1_ref[...], preferred_element_type=jnp.float32)
    b = jnp.dot(h, w3_ref[...], preferred_element_type=jnp.float32)
    g = a * b
    g = g * jax.nn.sigmoid(g)          # SiLU on the product (matches module)
    o_ref[...] = jnp.dot(g.astype(w2_ref.dtype), w2_ref[...],
                         preferred_element_type=jnp.float32).astype(o_ref.dtype)


def _mlp_kernel_tiled(h_ref, w1_ref, w3_ref, w2_ref, o_ref, acc_ref):
    """grid = (token_tiles, f_tiles); F is the trailing reduction axis.

    h_ref : (tm, H)   bf16 token tile (resident across F steps)
    w1_ref: (H, tf)   f1.weight.T tile
    w3_ref: (H, tf)   f3.weight.T tile
    w2_ref: (tf, H)   f2.weight.T tile
    o_ref : (tm, H)   output tile (written on the last F step)
    acc_ref:(tm, H)   f32 accumulator scratch
    """
    f = pl.program_id(1)

    @pl.when(f == 0)
    def _init():
        acc_ref[...] = jnp.zeros_like(acc_ref)

    h = h_ref[...]
    a = jnp.dot(h, w1_ref[...], preferred_element_type=jnp.float32)
    b = jnp.dot(h, w3_ref[...], preferred_element_type=jnp.float32)
    g = a * b
    g = g * jax.nn.sigmoid(g)          # SiLU on the product (matches module)
    acc_ref[...] += jnp.dot(g.astype(w2_ref.dtype), w2_ref[...],
                            preferred_element_type=jnp.float32)

    @pl.when(f == pl.num_programs(1) - 1)
    def _finalize():
        o_ref[...] = acc_ref[...].astype(o_ref.dtype)


# ----------------------------------------------------------------------------
# Tile selection helpers (run outside jit; shape math only)
# ----------------------------------------------------------------------------
def _round_up(x, m):
    return ((x + m - 1) // m) * m


def _default_config():
    """(tm, tf, vmem_limit_bytes) per TPU generation."""
    vmem = 64 * 1024 * 1024
    try:
        vmem = pltpu.get_tpu_info().vmem_capacity_bytes
    except Exception:
        pass
    if vmem >= 100 * 1024 * 1024:
        # v5e / v6e: 128 MiB VMEM.  Big token tile amortizes weight streaming
        # (v6e balance ~670 tokens/tile, v5e ~240).
        return 768, 512, 112 * 1024 * 1024
    # v7x: 64 MiB VMEM per TC.  Moderate token tile, smaller F tile, headroom.
    return 512, 256, 56 * 1024 * 1024


def _choose_f_tiling(F, tf_target):
    """Return (F_pad, tf_eff) with tf_eff | F_pad and lane-friendly sizes.

    Never falls back to a full-F weight block for large F (that would blow up
    VMEM); instead picks a multiple-of-128 divisor of F, or zero-pads F.
    """
    tf_target = max(128, tf_target)
    if F <= tf_target:
        fp = _round_up(F, 128)
        return fp, fp
    if F % tf_target == 0:
        return F, tf_target
    d = (tf_target // 128) * 128
    while d >= 128:
        if F % d == 0:
            return F, d
        d -= 128
    # No nice divisor: pad F (zero-padded gate columns / down-proj rows
    # contribute exactly zero to the output).
    return _round_up(F, tf_target), tf_target


# ----------------------------------------------------------------------------
# Wrapper
# ----------------------------------------------------------------------------
@functools.partial(jax.jit, static_argnames=("tm", "tf", "f_pad", "vmem_limit"))
def _sparse_top2_mlp_impl(hidden_state, w1_t, w3_t, w2_t, *,
                          tm, tf, f_pad, vmem_limit):
    orig_shape = hidden_state.shape
    out_dtype = hidden_state.dtype
    H = orig_shape[-1]
    F = w1_t.shape[1]

    h2d = hidden_state.reshape(-1, H)
    T = h2d.shape[0]
    t_pad = _round_up(T, tm)

    # bf16 operands for the MXU (f32 accumulation inside the kernel).  These
    # casts are no-ops when the caller already supplies bf16 weights.
    h_bf = h2d.astype(jnp.bfloat16)
    if t_pad != T:
        h_bf = jnp.pad(h_bf, ((0, t_pad - T), (0, 0)))
    w1_bf = w1_t.astype(jnp.bfloat16)
    w3_bf = w3_t.astype(jnp.bfloat16)
    w2_bf = w2_t.astype(jnp.bfloat16)
    if f_pad != F:
        w1_bf = jnp.pad(w1_bf, ((0, 0), (0, f_pad - F)))
        w3_bf = jnp.pad(w3_bf, ((0, 0), (0, f_pad - F)))
        w2_bf = jnp.pad(w2_bf, ((0, f_pad - F), (0, 0)))

    n_tok = t_pad // tm
    n_f = f_pad // tf

    # Weights are re-streamed once per token tile; count bytes, not elements.
    w_bytes = 2 * (w1_bf.size + w3_bf.size + w2_bf.size)
    cost = pl.CostEstimate(
        flops=6 * t_pad * H * f_pad,                # 3 matmuls x 2 flops/MAC
        transcendentals=t_pad * f_pad,              # sigmoid
        bytes_accessed=n_tok * w_bytes + 2 * h_bf.size
                       + t_pad * H * jnp.dtype(out_dtype).itemsize,
    )

    if n_f == 1:
        # Weights fit in one F step: single pass, no accumulator traffic.
        out = pl.pallas_call(
            _mlp_kernel_single,
            out_shape=jax.ShapeDtypeStruct((t_pad, H), out_dtype),
            grid_spec=pltpu.PrefetchScalarGridSpec(
                num_scalar_prefetch=0,
                grid=(n_tok,),
                in_specs=[
                    pl.BlockSpec((tm, H), lambda i: (i, 0)),
                    pl.BlockSpec((H, f_pad), lambda i: (0, 0)),
                    pl.BlockSpec((H, f_pad), lambda i: (0, 0)),
                    pl.BlockSpec((f_pad, H), lambda i: (0, 0)),
                ],
                out_specs=pl.BlockSpec((tm, H), lambda i: (i, 0)),
            ),
            compiler_params=pltpu.CompilerParams(
                dimension_semantics=("parallel",),
                vmem_limit_bytes=vmem_limit,
            ),
            cost_estimate=cost,
        )(h_bf, w1_bf, w3_bf, w2_bf)
    else:
        out = pl.pallas_call(
            _mlp_kernel_tiled,
            out_shape=jax.ShapeDtypeStruct((t_pad, H), out_dtype),
            grid_spec=pltpu.PrefetchScalarGridSpec(
                num_scalar_prefetch=0,
                grid=(n_tok, n_f),
                in_specs=[
                    pl.BlockSpec((tm, H), lambda i, f: (i, 0)),     # tokens
                    pl.BlockSpec((H, tf), lambda i, f: (0, f)),     # W1^T tile
                    pl.BlockSpec((H, tf), lambda i, f: (0, f)),     # W3^T tile
                    pl.BlockSpec((tf, H), lambda i, f: (f, 0)),     # W2^T tile
                ],
                out_specs=pl.BlockSpec((tm, H), lambda i, f: (i, 0)),
                scratch_shapes=[pltpu.VMEM((tm, H), jnp.float32)],
            ),
            compiler_params=pltpu.CompilerParams(
                dimension_semantics=("parallel", "arbitrary"),
                vmem_limit_bytes=vmem_limit,
            ),
            cost_estimate=cost,
        )(h_bf, w1_bf, w3_bf, w2_bf)

    return out[:T].reshape(orig_shape)


def sparse_top2_mlp(hidden_state, w1_t, w3_t, w2_t, *,
                    tm=None, tf=None, vmem_limit_bytes=None):
    """hidden_state: [..., H].  w*_t are the transposed Linear weights
    ([in, out]); pass them as bf16 to avoid per-call casts.

    Tile sizes and the VMEM limit default to per-generation values.
    """
    d_tm, d_tf, d_vmem = _default_config()
    tm = d_tm if tm is None else tm
    tf = d_tf if tf is None else tf
    vmem_limit_bytes = d_vmem if vmem_limit_bytes is None else vmem_limit_bytes

    H = hidden_state.shape[-1]
    F = w1_t.shape[1]
    T = 1
    for d in hidden_state.shape[:-1]:
        T *= d

    # Clamp the token tile for tiny (decode/demo) inputs so we don't pay for
    # a full 512/768-row padded tile; 16 keeps bf16 sublane packing legal.
    tm_eff = min(tm, max(16, _round_up(T, 16)))
    f_pad, tf_eff = _choose_f_tiling(F, tf)

    return _sparse_top2_mlp_impl(hidden_state, w1_t, w3_t, w2_t,
                                 tm=tm_eff, tf=tf_eff, f_pad=f_pad,
                                 vmem_limit=vmem_limit_bytes)


# ----------------------------------------------------------------------------
# Reference (mirrors the kernel's numerics: bf16 operands, f32 accumulation)
# ----------------------------------------------------------------------------
def _reference(hidden_state, w1_t, w3_t, w2_t):
    h = hidden_state.astype(jnp.bfloat16)
    a = jnp.dot(h, w1_t.astype(jnp.bfloat16), preferred_element_type=jnp.float32)
    b = jnp.dot(h, w3_t.astype(jnp.bfloat16), preferred_element_type=jnp.float32)
    g = a * b
    g = g * jax.nn.sigmoid(g)
    out = jnp.dot(g.astype(jnp.bfloat16), w2_t.astype(jnp.bfloat16),
                  preferred_element_type=jnp.float32)
    return out.astype(hidden_state.dtype)


if __name__ == "__main__":
    # Small shapes consistent with the module: hidden_size=128, ffn_dim=256,
    # batch=2, seq=8.
    batch, seq, hidden_dim, ffn_dim = 2, 8, 128, 256

    key = jax.random.PRNGKey(0)
    k_x, k1, k2, k3 = jax.random.split(key, 4)

    hidden_state = jax.random.normal(k_x, (batch, seq, hidden_dim),
                                     dtype=jnp.float32)

    # PyTorch f1.weight is (ffn, hidden); store transposes (in, out) so the
    # kernel does h @ W^T.  Pre-cast to bf16 once (avoids per-call casts).
    scale1 = 1.0 / jnp.sqrt(hidden_dim)
    scale2 = 1.0 / jnp.sqrt(ffn_dim)
    w1_t = (jax.random.normal(k1, (hidden_dim, ffn_dim), jnp.float32) * scale1
            ).astype(jnp.bfloat16)
    w3_t = (jax.random.normal(k3, (hidden_dim, ffn_dim), jnp.float32) * scale1
            ).astype(jnp.bfloat16)
    w2_t = (jax.random.normal(k2, (ffn_dim, hidden_dim), jnp.float32) * scale2
            ).astype(jnp.bfloat16)

    ref = _reference(hidden_state, w1_t, w3_t, w2_t)

    # Path 1: weights-resident single pass (n_f == 1 at these shapes).
    out = jax.block_until_ready(sparse_top2_mlp(hidden_state, w1_t, w3_t, w2_t))
    assert out.shape == (batch, seq, hidden_dim)
    assert jnp.allclose(out, ref, atol=2e-2, rtol=2e-2), "single-pass mismatch"

    # Path 2: exercise the F-reduction (accumulator) path with tf=128.
    out_tiled = jax.block_until_ready(
        sparse_top2_mlp(hidden_state, w1_t, w3_t, w2_t, tf=128))
    assert jnp.allclose(out_tiled, ref, atol=2e-2, rtol=2e-2), "tiled mismatch"

    print("KERNEL_OK")
</pallas_src>

<mosaic_0001>
module attributes {stable_mosaic.version = 11 : i64} {
  func.func @_mlp_kernel_single(%arg0: i32, %arg1: memref<16x128xbf16, #tpu.memory_space<vmem>>, %arg2: memref<128x256xbf16, #tpu.memory_space<vmem>>, %arg3: memref<128x256xbf16, #tpu.memory_space<vmem>>, %arg4: memref<256x128xbf16, #tpu.memory_space<vmem>>, %arg5: memref<16x128xf32, #tpu.memory_space<vmem>>) attributes {dimension_semantics = [#tpu.dimension_semantics<parallel>], iteration_bounds = array<i64: 1>, scalar_prefetch = 0 : i64, scratch_operands = 0 : i64, tpu.core_type = #tpu.core_type<tc>, window_params = [{transform_indices = @transform_0, window_bounds = array<i64: 16, 128>}, {pipeline_mode = #tpu.pipeline_mode<synchronous>, transform_indices = @transform_1, window_bounds = array<i64: 128, 256>}, {pipeline_mode = #tpu.pipeline_mode<synchronous>, transform_indices = @transform_2, window_bounds = array<i64: 128, 256>}, {pipeline_mode = #tpu.pipeline_mode<synchronous>, transform_indices = @transform_3, window_bounds = array<i64: 256, 128>}, {transform_indices = @transform_4, window_bounds = array<i64: 16, 128>}]} {
    %c0 = arith.constant 0 : index
    %c0_0 = arith.constant 0 : index
    %0 = vector.load %arg1[%c0, %c0_0] : memref<16x128xbf16, #tpu.memory_space<vmem>>, vector<16x128xbf16>
    %c0_1 = arith.constant 0 : index
    %c0_2 = arith.constant 0 : index
    %1 = vector.load %arg2[%c0_1, %c0_2] : memref<128x256xbf16, #tpu.memory_space<vmem>>, vector<128x256xbf16>
    %cst = arith.constant dense<0.000000e+00> : vector<16x256xf32>
    %2 = tpu.matmul %0, %1, %cst {dimension_numbers = #tpu.dot_dimension_numbers<[1], [0], [0], [1], [0, 0, 1, 1], [], []>} : vector<16x128xbf16>, vector<128x256xbf16>, vector<16x256xf32> -> vector<16x256xf32>
    %c0_3 = arith.constant 0 : index
    %c0_4 = arith.constant 0 : index
    %3 = vector.load %arg3[%c0_3, %c0_4] : memref<128x256xbf16, #tpu.memory_space<vmem>>, vector<128x256xbf16>
    %cst_5 = arith.constant dense<0.000000e+00> : vector<16x256xf32>
    %4 = tpu.matmul %0, %3, %cst_5 {dimension_numbers = #tpu.dot_dimension_numbers<[1], [0], [0], [1], [0, 0, 1, 1], [], []>} : vector<16x128xbf16>, vector<128x256xbf16>, vector<16x256xf32> -> vector<16x256xf32>
    %5 = arith.mulf %2, %4 : vector<16x256xf32>
    %6 = arith.negf %5 : vector<16x256xf32>
    %7 = math.exp %6 : vector<16x256xf32>
    %cst_6 = arith.constant 1.000000e+00 : f32
    %8 = vector.broadcast %cst_6 : f32 to vector<16x256xf32>
    %9 = arith.addf %8, %7 : vector<16x256xf32>
    %10 = arith.divf %8, %9 : vector<16x256xf32>
    %11 = arith.mulf %5, %10 : vector<16x256xf32>
    %12 = arith.truncf %11 : vector<16x256xf32> to vector<16x256xbf16>
    %c0_7 = arith.constant 0 : index
    %c0_8 = arith.constant 0 : index
    %13 = vector.load %arg4[%c0_7, %c0_8] : memref<256x128xbf16, #tpu.memory_space<vmem>>, vector<256x128xbf16>
    %cst_9 = arith.constant dense<0.000000e+00> : vector<16x128xf32>
    %14 = tpu.matmul %12, %13, %cst_9 {dimension_numbers = #tpu.dot_dimension_numbers<[1], [0], [0], [1], [0, 0, 1, 1], [], []>} : vector<16x256xbf16>, vector<256x128xbf16>, vector<16x128xf32> -> vector<16x128xf32>
    %c0_10 = arith.constant 0 : index
    %c0_11 = arith.constant 0 : index
    %15 = vector.load %arg5[%c0_10, %c0_11] : memref<16x128xf32, #tpu.memory_space<vmem>>, vector<16x128xf32>
    tpu.vector_store %arg5[%c0_10, %c0_11], %14 {strides = array<i32>} : memref<16x128xf32, #tpu.memory_space<vmem>>, vector<16x128xf32>,
    return
  }
  func.func @transform_0(%arg0: i32) -> (i32, i32) {
    %c0_i32 = arith.constant 0 : i32
    %c0_i32_0 = arith.constant 0 : i32
    return %arg0, %c0_i32 : i32, i32
  }
  func.func @transform_1(%arg0: i32) -> (i32, i32) {
    %c0_i32 = arith.constant 0 : i32
    %c0_i32_0 = arith.constant 0 : i32
    %c0_i32_1 = arith.constant 0 : i32
    return %c0_i32, %c0_i32_0 : i32, i32
  }
  func.func @transform_2(%arg0: i32) -> (i32, i32) {
    %c0_i32 = arith.constant 0 : i32
    %c0_i32_0 = arith.constant 0 : i32
    %c0_i32_1 = arith.constant 0 : i32
    return %c0_i32, %c0_i32_0 : i32, i32
  }
  func.func @transform_3(%arg0: i32) -> (i32, i32) {
    %c0_i32 = arith.constant 0 : i32
    %c0_i32_0 = arith.constant 0 : i32
    %c0_i32_1 = arith.constant 0 : i32
    return %c0_i32, %c0_i32_0 : i32, i32
  }
  func.func @transform_4(%arg0: i32) -> (i32, i32) {
    %c0_i32 = arith.constant 0 : i32
    %c0_i32_0 = arith.constant 0 : i32
    return %arg0, %c0_i32 : i32, i32
  }
}

</mosaic_0001>

<llo_original>
// kernel: _sparse_top2_mlp_impl.1
$region0: #{_sparse_top2_mlp_impl.1}
  #allocation0 [shape = 'u32[]', space=smem, size = 0x4, offset = 0x4, fixed_abs, tag = 'smem constant byte address 0x4 - core index']
  #allocation1 [shape = 'u32[144,128]{1,0:T(1,128)}', space=vmem, size = 0x12000, scoped, tag = 'internal scratch']
  %s0 = inlined_call_operand.vmem [shape: bf16[16,128], index: 0, kind: input, shape index: {}]
  %s1 = inlined_call_operand.hbm [shape: bf16[128,256], index: 1, kind: input, shape index: {}]
  %s2 = inlined_call_operand.hbm [shape: bf16[128,256], index: 2, kind: input, shape index: {}]
  %s3 = inlined_call_operand.hbm [shape: bf16[256,128], index: 3, kind: input, shape index: {}]
  %s4 = inlined_call_operand.hbm [shape: f32[16,128], index: 4, kind: output, shape index: {}]
  %s5 = sld [smem:[#allocation0]]
  $region38: #{_sparse_top2_mlp_impl.1} parent=0
    _
  %s7 = ssub.s32 1, %s5
  %s8 = scalar_select 0, %s7, %s5
  $region1: #{_sparse_top2_mlp_impl.1} parent=0
    #allocation2 [shape = 'u8[65536]{0}', space=vmem, size = 0x10000, scoped, tag = 'input window, operand 1, single buffered']
    #allocation3 [shape = 's32[1]{0}', space=sflag, size = 0x4, scoped, tag = 'scoped memory for _sparse_top2_mlp_impl.1']
    #allocation4 [shape = 's32[1]{0}', space=sflag, size = 0x4, scoped, tag = 'scoped memory for _sparse_top2_mlp_impl.1']
    #allocation5 [shape = 'u8[65536]{0}', space=vmem, size = 0x10000, scoped, tag = 'input window, operand 2, single buffered']
    #allocation6 [shape = 's32[1]{0}', space=sflag, size = 0x4, scoped, tag = 'scoped memory for _sparse_top2_mlp_impl.1']
    #allocation7 [shape = 'u8[65536]{0}', space=vmem, size = 0x10000, scoped, tag = 'input window, operand 3, single buffered']
    #allocation8 [shape = 'u8[8192]{0}', space=vmem, size = 0x2000, scoped, tag = 'output window, operand 0, single buffered']
    %9 = vsyncpa [#allocation3], 0
    %10 = vsyncpa [#allocation6], 0
    %11 = vsyncpa [#allocation4], 0
    // Predicated region
    $region2: #{_sparse_top2_mlp_impl.1} parent=1 // pred_check
      _
    $region3: #{_sparse_top2_mlp_impl.1} parent=1 // pred_check_branch
      %13 = sbr.rel (0) target = $region5
    $region4: #{_sparse_top2_mlp_impl.1} parent=1 // pred_region
      _
    $region5: #{_sparse_top2_mlp_impl.1} parent=1 // pred_fallthru
      _
    // Predicated region
    $region6: #{_sparse_top2_mlp_impl.1} parent=1 // pred_check
      _
    $region7: #{_sparse_top2_mlp_impl.1} parent=1 // pred_check_branch
      %15 = sbr.rel (0) target = $region9
    $region8: #{_sparse_top2_mlp_impl.1} parent=1 // pred_region
      %s17 = ssub.s32 2048, 2048
      %18 = vsyncadd [#allocation3], %s17
      %s19 = sshll.u32 [#allocation2], 4
      %s20 = int_to_ptr.vmem [resolvable:$true] %s19
      %25 = dma.hbm_to_vmem [thread:$0]  %s1, 2048, %s20, [#allocation3], 128, 128, 8
    $region9: #{_sparse_top2_mlp_impl.1} parent=1 // pred_fallthru
      _
    // Predicated region
    $region10: #{_sparse_top2_mlp_impl.1} parent=1 // pred_check
      _
    $region11: #{_sparse_top2_mlp_impl.1} parent=1 // pred_check_branch
      %27 = sbr.rel (0) target = $region13
    $region12: #{_sparse_top2_mlp_impl.1} parent=1 // pred_region
      %s29 = ssub.s32 2048, 2048
      %30 = vsyncadd [#allocation6], %s29
      %s31 = sshll.u32 [#allocation5], 4
      %s32 = int_to_ptr.vmem [resolvable:$true] %s31
      %37 = dma.hbm_to_vmem [thread:$0]  %s2, 2048, %s32, [#allocation6], 128, 128, 8
    $region13: #{_sparse_top2_mlp_impl.1} parent=1 // pred_fallthru
      _
    // Predicated region
    $region14: #{_sparse_top2_mlp_impl.1} parent=1 // pred_check
      _
    $region15: #{_sparse_top2_mlp_impl.1} parent=1 // pred_check_branch
      %39 = sbr.rel (0) target = $region17
    $region16: #{_sparse_top2_mlp_impl.1} parent=1 // pred_region
      %s41 = ssub.s32 2048, 2048
      %42 = vsyncadd [#allocation6], %s41
      %s43 = sshll.u32 [#allocation7], 4
      %s44 = int_to_ptr.vmem [resolvable:$true] %s43
      %49 = dma.hbm_to_vmem [thread:$0]  %s3, 2048, %s44, [#allocation6], 64, 64, 4
    $region17: #{_sparse_top2_mlp_impl.1} parent=1 // pred_fallthru
      _
    // Predicated region
    $region18: #{_sparse_top2_mlp_impl.1} parent=1 // pred_check
      _
    $region19: #{_sparse_top2_mlp_impl.1} parent=1 // pred_check_branch
      %51 = sbr.rel (0) target = $region21
    $region20: #{_sparse_top2_mlp_impl.1} parent=1 // pred_region
      %52 = dma.done [#allocation3], 2048
    $region21: #{_sparse_top2_mlp_impl.1} parent=1 // pred_fallthru
      _
    // Predicated region
    $region22: #{_sparse_top2_mlp_impl.1} parent=1 // pred_check
      _
    $region23: #{_sparse_top2_mlp_impl.1} parent=1 // pred_check_branch
      %54 = sbr.rel (0) target = $region25
    $region24: #{_sparse_top2_mlp_impl.1} parent=1 // pred_region
      %55 = dma.done [#allocation6], 2048
    $region25: #{_sparse_top2_mlp_impl.1} parent=1 // pred_fallthru
      _
    // Predicated region
    $region26: #{_sparse_top2_mlp_impl.1} parent=1 // pred_check
      _
    $region27: #{_sparse_top2_mlp_impl.1} parent=1 // pred_check_branch
      %57 = sbr.rel (0) target = $region29
    $region28: #{_sparse_top2_mlp_impl.1} parent=1 // pred_region
      %58 = dma.done [#allocation6], 2048
    $region29: #{_sparse_top2_mlp_impl.1} parent=1 // pred_fallthru
      _
    %v60 = vld [vmem:[%s0] sm:$0xf]
    %v61 = vld [vmem:[%s0 + $0x4] sm:$0xf]
    %v62 = vld [vmem:[#allocation2] sm:$0xff]
    %v63 = vld [vmem:[#allocation2 + $0x8] sm:$0xff]
    %v64 = vld [vmem:[#allocation2 + $0x10] sm:$0xff]
    %v65 = vld [vmem:[#allocation2 + $0x18] sm:$0xff]
    %v66 = vld [vmem:[#allocation2 + $0x20] sm:$0xff]
    %v67 = vld [vmem:[#allocation2 + $0x28] sm:$0xff]
    %v68 = vld [vmem:[#allocation2 + $0x30] sm:$0xff]
    %v69 = vld [vmem:[#allocation2 + $0x38] sm:$0xff]
    %v70 = vld [vmem:[#allocation2 + $0x40] sm:$0xff]
    %v71 = vld [vmem:[#allocation2 + $0x48] sm:$0xff]
    %v72 = vld [vmem:[#allocation2 + $0x50] sm:$0xff]
    %v73 = vld [vmem:[#allocation2 + $0x58] sm:$0xff]
    %v74 = vld [vmem:[#allocation2 + $0x60] sm:$0xff]
    %v75 = vld [vmem:[#allocation2 + $0x68] sm:$0xff]
    %v76 = vld [vmem:[#allocation2 + $0x70] sm:$0xff]
    %v77 = vld [vmem:[#allocation2 + $0x78] sm:$0xff]
    %v80 = vunpack.c.l.b16 %v60
    %v81 = vunpack.c.l.b16 %v61
    %v82 = vpack.c.b16 %v81, %v80
    %v100 = vunpack.c.l.b16 %v62
    %v101 = vunpack.c.h.b16 %v62
    %v102 = vunpack.c.l.b16 %v63
    %v103 = vunpack.c.h.b16 %v63
    %v104 = vunpack.c.l.b16 %v64
    %v105 = vunpack.c.h.b16 %v64
    %v106 = vunpack.c.l.b16 %v65
    %v107 = vunpack.c.h.b16 %v65
    %v108 = vunpack.c.l.b16 %v66
    %v109 = vunpack.c.h.b16 %v66
    %v110 = vunpack.c.l.b16 %v67
    %v111 = vunpack.c.h.b16 %v67
    %v112 = vunpack.c.l.b16 %v68
    %v113 = vunpack.c.h.b16 %v68
    %v114 = vunpack.c.l.b16 %v69
    %v115 = vunpack.c.h.b16 %v69
    %v116 = vunpack.c.l.b16 %v70
    %v117 = vunpack.c.h.b16 %v70
    %v118 = vunpack.c.l.b16 %v71
    %v119 = vunpack.c.h.b16 %v71
    %v120 = vunpack.c.l.b16 %v72
    %v121 = vunpack.c.h.b16 %v72
    %v122 = vunpack.c.l.b16 %v73
    %v123 = vunpack.c.h.b16 %v73
    %v124 = vunpack.c.l.b16 %v74
    %v125 = vunpack.c.h.b16 %v74
    %v126 = vunpack.c.l.b16 %v75
    %v127 = vunpack.c.h.b16 %v75
    %v128 = vunpack.c.l.b16 %v76
    %v129 = vunpack.c.h.b16 %v76
    %v130 = vunpack.c.l.b16 %v77
    %v131 = vunpack.c.h.b16 %v77
    %v132 = vpack.c.b16 %v102, %v100
    %v133 = vpack.c.b16 %v103, %v101
    %v134 = vpack.c.b16 %v106, %v104
    %v135 = vpack.c.b16 %v107, %v105
    %v136 = vpack.c.b16 %v110, %v108
    %v137 = vpack.c.b16 %v111, %v109
    %v138 = vpack.c.b16 %v114, %v112
    %v139 = vpack.c.b16 %v115, %v113
    %v140 = vpack.c.b16 %v118, %v116
    %v141 = vpack.c.b16 %v119, %v117
    %v142 = vpack.c.b16 %v122, %v120
    %v143 = vpack.c.b16 %v123, %v121
    %v144 = vpack.c.b16 %v126, %v124
    %v145 = vpack.c.b16 %v127, %v125
    %v146 = vpack.c.b16 %v130, %v128
    %v147 = vpack.c.b16 %v131, %v129
    %164 = vmatprep.subr.bf16.mxu0 %v133
    %165 = vmatpush1.bf16.msra.mxu0 %v132
    %166 = vmatprep.subr.bf16.mxu0 %v135
    %167 = vmatpush1.bf16.msra.mxu0 %v134
    %168 = vmatprep.subr.bf16.mxu0 %v137
    %169 = vmatpush1.bf16.msra.mxu0 %v136
    %170 = vmatprep.subr.bf16.mxu0 %v139
    %171 = vmatpush1.bf16.msra.mxu0 %v138
    %172 = vmatprep.subr.bf16.mxu0 %v141
    %173 = vmatpush1.bf16.msra.mxu0 %v140
    %174 = vmatprep.subr.bf16.mxu0 %v143
    %175 = vmatpush1.bf16.msra.mxu0 %v142
    %176 = vmatprep.subr.bf16.mxu0 %v145
    %177 = vmatpush1.bf16.msra.mxu0 %v144
    %178 = vmatprep.subr.bf16.mxu0 %v147
    %179 = vmatpush1.bf16.msra.mxu0 %v146
    %180 = vmatprep.subr.bf16.mxu0 0
    %181 = vmatpush1.bf16.msra.mxu0 0
    %182 = vmatprep.subr.bf16.mxu0 0
    %183 = vmatpush1.bf16.msra.mxu0 0
    %184 = vmatprep.subr.bf16.mxu0 0
    %185 = vmatpush1.bf16.msra.mxu0 0
    %186 = vmatprep.subr.bf16.mxu0 0
    %187 = vmatpush1.bf16.msra.mxu0 0
    %188 = vmatprep.subr.bf16.mxu0 0
    %189 = vmatpush1.bf16.msra.mxu0 0
    %190 = vmatprep.subr.bf16.mxu0 0
    %191 = vmatpush1.bf16.msra.mxu0 0
    %192 = vmatprep.subr.bf16.mxu0 0
    %193 = vmatpush1.bf16.msra.mxu0 0
    %194 = vmatprep.subr.bf16.mxu0 0
    %195 = vmatpush1.bf16.msra.mxu0 0
    %196 = vmatprep.mubr.bf16.mxu0 0
    %197 = vmatmul.mubr.bf16.gmra.mrb[0].mxu0 %v82
    %v198 = vpop.f32.mrb[0].mxu0
    %v199 = vadd.f32 0.0, %v198
    %v200 = vpop.f32.mrb[0].mxu0
    %v201 = vadd.f32 0.0, %v200
    %v202 = vpop.f32.mrb[0].mxu0
    %v203 = vadd.f32 0.0, %v202
    %v204 = vpop.f32.mrb[0].mxu0
    %v205 = vadd.f32 0.0, %v204
    %206 = vdwg.mxu0
    %v207 = vld [vmem:[#allocation5] sm:$0xff]
    %v208 = vld [vmem:[#allocation5 + $0x8] sm:$0xff]
    %v209 = vld [vmem:[#allocation5 + $0x10] sm:$0xff]
    %v210 = vld [vmem:[#allocation5 + $0x18] sm:$0xff]
    %v211 = vld [vmem:[#allocation5 + $0x20] sm:$0xff]
    %v212 = vld [vmem:[#allocation5 + $0x28] sm:$0xff]
    %v213 = vld [vmem:[#allocation5 + $0x30] sm:$0xff]
    %v214 = vld [vmem:[#allocation5 + $0x38] sm:$0xff]
    %v215 = vld [vmem:[#allocation5 + $0x40] sm:$0xff]
    %v216 = vld [vmem:[#allocation5 + $0x48] sm:$0xff]
    %v217 = vld [vmem:[#allocation5 + $0x50] sm:$0xff]
    %v218 = vld [vmem:[#allocation5 + $0x58] sm:$0xff]
    %v219 = vld [vmem:[#allocation5 + $0x60] sm:$0xff]
    %v220 = vld [vmem:[#allocation5 + $0x68] sm:$0xff]
    %v221 = vld [vmem:[#allocation5 + $0x70] sm:$0xff]
    %v222 = vld [vmem:[#allocation5 + $0x78] sm:$0xff]
    %v239 = vunpack.c.l.b16 %v207
    %v240 = vunpack.c.h.b16 %v207
    %v241 = vunpack.c.l.b16 %v208
    %v242 = vunpack.c.h.b16 %v208
    %v243 = vunpack.c.l.b16 %v209
    %v244 = vunpack.c.h.b16 %v209
    %v245 = vunpack.c.l.b16 %v210
    %v246 = vunpack.c.h.b16 %v210
    %v247 = vunpack.c.l.b16 %v211
    %v248 = vunpack.c.h.b16 %v211
    %v249 = vunpack.c.l.b16 %v212
    %v250 = vunpack.c.h.b16 %v212
    %v251 = vunpack.c.l.b16 %v213
    %v252 = vunpack.c.h.b16 %v213
    %v253 = vunpack.c.l.b16 %v214
    %v254 = vunpack.c.h.b16 %v214
    %v255 = vunpack.c.l.b16 %v215
    %v256 = vunpack.c.h.b16 %v215
    %v257 = vunpack.c.l.b16 %v216
    %v258 = vunpack.c.h.b16 %v216
    %v259 = vunpack.c.l.b16 %v217
    %v260 = vunpack.c.h.b16 %v217
    %v261 = vunpack.c.l.b16 %v218
    %v262 = vunpack.c.h.b16 %v218
    %v263 = vunpack.c.l.b16 %v219
    %v264 = vunpack.c.h.b16 %v219
    %v265 = vunpack.c.l.b16 %v220
    %v266 = vunpack.c.h.b16 %v220
    %v267 = vunpack.c.l.b16 %v221
    %v268 = vunpack.c.h.b16 %v221
    %v269 = vunpack.c.l.b16 %v222
    %v270 = vunpack.c.h.b16 %v222
    %v271 = vpack.c.b16 %v241, %v239
    %v272 = vpack.c.b16 %v242, %v240
    %v273 = vpack.c.b16 %v245, %v243
    %v274 = vpack.c.b16 %v246, %v244
    %v275 = vpack.c.b16 %v249, %v247
    %v276 = vpack.c.b16 %v250, %v248
    %v277 = vpack.c.b16 %v253, %v251
    %v278 = vpack.c.b16 %v254, %v252
    %v279 = vpack.c.b16 %v257, %v255
    %v280 = vpack.c.b16 %v258, %v256
    %v281 = vpack.c.b16 %v261, %v259
    %v282 = vpack.c.b16 %v262, %v260
    %v283 = vpack.c.b16 %v265, %v263
    %v284 = vpack.c.b16 %v266, %v264
    %v285 = vpack.c.b16 %v269, %v267
    %v286 = vpack.c.b16 %v270, %v268
    %303 = vmatprep.subr.bf16.mxu0 %v272
    %304 = vmatpush1.bf16.msra.mxu0 %v271
    %305 = vmatprep.subr.bf16.mxu0 %v274
    %306 = vmatpush1.bf16.msra.mxu0 %v273
    %307 = vmatprep.subr.bf16.mxu0 %v276
    %308 = vmatpush1.bf16.msra.mxu0 %v275
    %309 = vmatprep.subr.bf16.mxu0 %v278
    %310 = vmatpush1.bf16.msra.mxu0 %v277
    %311 = vmatprep.subr.bf16.mxu0 %v280
    %312 = vmatpush1.bf16.msra.mxu0 %v279
    %313 = vmatprep.subr.bf16.mxu0 %v282
    %314 = vmatpush1.bf16.msra.mxu0 %v281
    %315 = vmatprep.subr.bf16.mxu0 %v284
    %316 = vmatpush1.bf16.msra.mxu0 %v283
    %317 = vmatprep.subr.bf16.mxu0 %v286
    %318 = vmatpush1.bf16.msra.mxu0 %v285
    %319 = vmatprep.subr.bf16.mxu0 0
    %320 = vmatpush1.bf16.msra.mxu0 0
    %321 = vmatprep.subr.bf16.mxu0 0
    %322 = vmatpush1.bf16.msra.mxu0 0
    %323 = vmatprep.subr.bf16.mxu0 0
    %324 = vmatpush1.bf16.msra.mxu0 0
    %325 = vmatprep.subr.bf16.mxu0 0
    %326 = vmatpush1.bf16.msra.mxu0 0
    %327 = vmatprep.subr.bf16.mxu0 0
    %328 = vmatpush1.bf16.msra.mxu0 0
    %329 = vmatprep.subr.bf16.mxu0 0
    %330 = vmatpush1.bf16.msra.mxu0 0
    %331 = vmatprep.subr.bf16.mxu0 0
    %332 = vmatpush1.bf16.msra.mxu0 0
    %333 = vmatprep.subr.bf16.mxu0 0
    %334 = vmatpush1.bf16.msra.mxu0 0
    %335 = vmatprep.mubr.bf16.mxu0 0
    %336 = vmatmul.mubr.bf16.gmra.mrb[0].mxu0 %v82
    %v337 = vpop.f32.mrb[0].mxu0
    %v338 = vadd.f32 0.0, %v337
    %v339 = vpop.f32.mrb[0].mxu0
    %v340 = vadd.f32 0.0, %v339
    %v341 = vpop.f32.mrb[0].mxu0
    %v342 = vadd.f32 0.0, %v341
    %v343 = vpop.f32.mrb[0].mxu0
    %v344 = vadd.f32 0.0, %v343
    %345 = vdwg.mxu0
    %v346 = vmul.f32 %v199, %v338
    %v347 = vmul.f32 %v201, %v340
    %v348 = vmul.f32 %v203, %v342
    %v349 = vmul.f32 %v205, %v344
    %v350 = vxor.u32 %v346, 2147483648
    %v351 = vxor.u32 %v347, 2147483648
    %v352 = vxor.u32 %v348, 2147483648
    %v353 = vxor.u32 %v349, 2147483648
    %v354 = vmul.f32 %v350, 1.442695
    %v355 = vpow.pop %v354
    %v356 = vmul.f32 %v351, 1.442695
    %v357 = vpow.pop %v356
    %v358 = vmul.f32 %v352, 1.442695
    %v359 = vpow.pop %v358
    %v360 = vmul.f32 %v353, 1.442695
    %v361 = vpow.pop %v360
    %v362 = vadd.f32 %v355, 1.0
    %v363 = vadd.f32 %v357, 1.0
    %v364 = vadd.f32 %v359, 1.0
    %v365 = vadd.f32 %v361, 1.0
    %v366 = vrcp.pop %v362
    %v367 = vmul.f32 1.0, %v366
    %v368 = vrcp.pop %v363
    %v369 = vmul.f32 1.0, %v368
    %v370 = vrcp.pop %v364
    %v371 = vmul.f32 1.0, %v370
    %v372 = vrcp.pop %v365
    %v373 = vmul.f32 1.0, %v372
    %v374 = vmul.f32 %v346, %v367
    %v375 = vmul.f32 %v347, %v369
    %v376 = vmul.f32 %v348, %v371
    %v377 = vmul.f32 %v349, %v373
    %v378 = vpack.c.bf16 %v376, %v374
    %v379 = vpack.c.bf16 %v377, %v375
    %v380 = vld [vmem:[#allocation7] sm:$0xf]
    %v381 = vld [vmem:[#allocation7 + $0x4] sm:$0xf]
    %v382 = vld [vmem:[#allocation7 + $0x8] sm:$0xf]
    %v383 = vld [vmem:[#allocation7 + $0xc] sm:$0xf]
    %v384 = vld [vmem:[#allocation7 + $0x10] sm:$0xf]
    %v385 = vld [vmem:[#allocation7 + $0x14] sm:$0xf]
    %v386 = vld [vmem:[#allocation7 + $0x18] sm:$0xf]
    %v387 = vld [vmem:[#allocation7 + $0x1c] sm:$0xf]
    %v388 = vld [vmem:[#allocation7 + $0x20] sm:$0xf]
    %v389 = vld [vmem:[#allocation7 + $0x24] sm:$0xf]
    %v390 = vld [vmem:[#allocation7 + $0x28] sm:$0xf]
    %v391 = vld [vmem:[#allocation7 + $0x2c] sm:$0xf]
    %v392 = vld [vmem:[#allocation7 + $0x30] sm:$0xf]
    %v393 = vld [vmem:[#allocation7 + $0x34] sm:$0xf]
    %v394 = vld [vmem:[#allocation7 + $0x38] sm:$0xf]
    %v395 = vld [vmem:[#allocation7 + $0x3c] sm:$0xf]
    %v396 = vld [vmem:[#allocation7 + $0x40] sm:$0xf]
    %v397 = vld [vmem:[#allocation7 + $0x44] sm:$0xf]
    %v398 = vld [vmem:[#allocation7 + $0x48] sm:$0xf]
    %v399 = vld [vmem:[#allocation7 + $0x4c] sm:$0xf]
    %v400 = vld [vmem:[#allocation7 + $0x50] sm:$0xf]
    %v401 = vld [vmem:[#allocation7 + $0x54] sm:$0xf]
    %v402 = vld [vmem:[#allocation7 + $0x58] sm:$0xf]
    %v403 = vld [vmem:[#allocation7 + $0x5c] sm:$0xf]
    %v404 = vld [vmem:[#allocation7 + $0x60] sm:$0xf]
    %v405 = vld [vmem:[#allocation7 + $0x64] sm:$0xf]
    %v406 = vld [vmem:[#allocation7 + $0x68] sm:$0xf]
    %v407 = vld [vmem:[#allocation7 + $0x6c] sm:$0xf]
    %v408 = vld [vmem:[#allocation7 + $0x70] sm:$0xf]
    %v409 = vld [vmem:[#allocation7 + $0x74] sm:$0xf]
    %v410 = vld [vmem:[#allocation7 + $0x78] sm:$0xf]
    %v411 = vld [vmem:[#allocation7 + $0x7c] sm:$0xf]
    %v444 = vunpack.c.l.b16 %v380
    %v445 = vunpack.c.l.b16 %v381
    %v446 = vunpack.c.l.b16 %v382
    %v447 = vunpack.c.l.b16 %v383
    %v448 = vunpack.c.l.b16 %v384
    %v449 = vunpack.c.l.b16 %v385
    %v450 = vunpack.c.l.b16 %v386
    %v451 = vunpack.c.l.b16 %v387
    %v452 = vunpack.c.l.b16 %v388
    %v453 = vunpack.c.l.b16 %v389
    %v454 = vunpack.c.l.b16 %v390
    %v455 = vunpack.c.l.b16 %v391
    %v456 = vunpack.c.l.b16 %v392
    %v457 = vunpack.c.l.b16 %v393
    %v458 = vunpack.c.l.b16 %v394
    %v459 = vunpack.c.l.b16 %v395
    %v460 = vunpack.c.l.b16 %v396
    %v461 = vunpack.c.l.b16 %v397
    %v462 = vunpack.c.l.b16 %v398
    %v463 = vunpack.c.l.b16 %v399
    %v464 = vunpack.c.l.b16 %v400
    %v465 = vunpack.c.l.b16 %v401
    %v466 = vunpack.c.l.b16 %v402
    %v467 = vunpack.c.l.b16 %v403
    %v468 = vunpack.c.l.b16 %v404
    %v469 = vunpack.c.l.b16 %v405
    %v470 = vunpack.c.l.b16 %v406
    %v471 = vunpack.c.l.b16 %v407
    %v472 = vunpack.c.l.b16 %v408
    %v473 = vunpack.c.l.b16 %v409
    %v474 = vunpack.c.l.b16 %v410
    %v475 = vunpack.c.l.b16 %v411
    %v476 = vpack.c.b16 %v445, %v444
    %v477 = vpack.c.b16 %v447, %v446
    %v478 = vpack.c.b16 %v449, %v448
    %v479 = vpack.c.b16 %v451, %v450
    %v480 = vpack.c.b16 %v453, %v452
    %v481 = vpack.c.b16 %v455, %v454
    %v482 = vpack.c.b16 %v457, %v456
    %v483 = vpack.c.b16 %v459, %v458
    %v484 = vpack.c.b16 %v461, %v460
    %v485 = vpack.c.b16 %v463, %v462
    %v486 = vpack.c.b16 %v465, %v464
    %v487 = vpack.c.b16 %v467, %v466
    %v488 = vpack.c.b16 %v469, %v468
    %v489 = vpack.c.b16 %v471, %v470
    %v490 = vpack.c.b16 %v473, %v472
    %v491 = vpack.c.b16 %v475, %v474
    %508 = vmatprep.subr.bf16.mxu0 0
    %509 = vmatpush1.bf16.msra.mxu0 %v476
    %510 = vmatprep.subr.bf16.mxu0 0
    %511 = vmatpush1.bf16.msra.mxu0 %v477
    %512 = vmatprep.subr.bf16.mxu0 0
    %513 = vmatpush1.bf16.msra.mxu0 %v478
    %514 = vmatprep.subr.bf16.mxu0 0
    %515 = vmatpush1.bf16.msra.mxu0 %v479
    %516 = vmatprep.subr.bf16.mxu0 0
    %517 = vmatpush1.bf16.msra.mxu0 %v480
    %518 = vmatprep.subr.bf16.mxu0 0
    %519 = vmatpush1.bf16.msra.mxu0 %v481
    %520 = vmatprep.subr.bf16.mxu0 0
    %521 = vmatpush1.bf16.msra.mxu0 %v482
    %522 = vmatprep.subr.bf16.mxu0 0
    %523 = vmatpush1.bf16.msra.mxu0 %v483
    %524 = vmatprep.subr.bf16.mxu0 0
    %525 = vmatpush1.bf16.msra.mxu0 %v484
    %526 = vmatprep.subr.bf16.mxu0 0
    %527 = vmatpush1.bf16.msra.mxu0 %v485
    %528 = vmatprep.subr.bf16.mxu0 0
    %529 = vmatpush1.bf16.msra.mxu0 %v486
    %530 = vmatprep.subr.bf16.mxu0 0
    %531 = vmatpush1.bf16.msra.mxu0 %v487
    %532 = vmatprep.subr.bf16.mxu0 0
    %533 = vmatpush1.bf16.msra.mxu0 %v488
    %534 = vmatprep.subr.bf16.mxu0 0
    %535 = vmatpush1.bf16.msra.mxu0 %v489
    %536 = vmatprep.subr.bf16.mxu0 0
    %537 = vmatpush1.bf16.msra.mxu0 %v490
    %538 = vmatprep.subr.bf16.mxu0 0
    %539 = vmatpush1.bf16.msra.mxu0 %v491
    %540 = vmatprep.mubr.bf16.mxu0 %v379
    %541 = vmatmul.mubr.bf16.gmra.mrb[0].mxu0 %v378
    %v542 = vpop.f32.mrb[0].mxu0
    %v543 = vadd.f32 0.0, %v542
    %v544 = vpop.f32.mrb[0].mxu0
    %v545 = vpop.f32.mrb[0].mxu0
    %v546 = vadd.f32 0.0, %v545
    %v547 = vpop.f32.mrb[0].mxu0
    %548 = vdwg.mxu0
    %549 = vst [vmem:[#allocation8] sm:$0xff] %v543
    %550 = vst [vmem:[#allocation8 + $0x8] sm:$0xff] %v546
    // Predicated region
    $region30: #{_sparse_top2_mlp_impl.1} parent=1 // pred_check
      _
    $region31: #{_sparse_top2_mlp_impl.1} parent=1 // pred_check_branch
      %552 = sbr.rel (0) target = $region33
    $region32: #{_sparse_top2_mlp_impl.1} parent=1 // pred_region
      %s554 = ssub.s32 256, 256
      %555 = vsyncadd [#allocation4], %s554
      %s556 = sshll.u32 [#allocation8], 4
      %s557 = int_to_ptr.vmem [resolvable:$true] %s556
      %562 = dma.vmem_to_hbm [thread:$0]  %s557, 256, %s4, [#allocation4], 128, 128, 8
    $region33: #{_sparse_top2_mlp_impl.1} parent=1 // pred_fallthru
      _
    // Predicated region
    $region34: #{_sparse_top2_mlp_impl.1} parent=1 // pred_check
      _
    $region35: #{_sparse_top2_mlp_impl.1} parent=1 // pred_check_branch
      %564 = sbr.rel (0) target = $region37
    $region36: #{_sparse_top2_mlp_impl.1} parent=1 // pred_region
      %565 = dma.done [#allocation4], 256
    $region37: #{_sparse_top2_mlp_impl.1} parent=1 // pred_fallthru
      _
    %566 = vsyncpa [#allocation3], 1
    %567 = vsyncpa [#allocation6], 1
    %568 = vsyncpa [#allocation4], 1

</llo_original>
